<compile_context>
chip_gen: v5e
topology: v5e:2x2
jax: 0.10.0
libtpu: 0.0.40
codegen_flags: <defaults>
</compile_context>

<pallas_src>
import jax
import jax.numpy as jnp
from jax.experimental import pallas as pl
from jax.experimental.pallas import tpu as pltpu

LAYER_SIZES = [288, 64, 128, 128, 64, 3]
OUT_PAD = 128            # lane-dense padded output width; real logits live in [:, :3]
DEFAULT_TILE_B = 1024    # rows per grid step (amortizes ~0.35us/step overhead)


def _round_up(n, m):
    return ((n + m - 1) // m) * m


def _mlp_kernel(x_ref,
                w1_ref, b1_ref,
                w2_ref, b2_ref,
                w3_ref, b3_ref,
                w4_ref, b4_ref,
                w5_ref, b5_ref,
                o_ref):
    # Whole 5-layer MLP fused: intermediate activations never touch HBM.
    # MXU inputs are bf16; accumulation + elementwise path in f32.
    x = x_ref[...]                                             # bf16 (TILE_B, 288)

    h = jnp.dot(x, w1_ref[...], preferred_element_type=jnp.float32) + b1_ref[...]
    h = jnp.maximum(h, 0.0)

    h = jnp.dot(h.astype(jnp.bfloat16), w2_ref[...],
                preferred_element_type=jnp.float32) + b2_ref[...]
    h = jnp.maximum(h, 0.0)

    h = jnp.dot(h.astype(jnp.bfloat16), w3_ref[...],
                preferred_element_type=jnp.float32) + b3_ref[...]
    h = jnp.maximum(h, 0.0)

    h = jnp.dot(h.astype(jnp.bfloat16), w4_ref[...],
                preferred_element_type=jnp.float32) + b4_ref[...]
    h = jnp.maximum(h, 0.0)

    h = jnp.dot(h.astype(jnp.bfloat16), w5_ref[...],
                preferred_element_type=jnp.float32) + b5_ref[...]
    o_ref[...] = h.astype(o_ref.dtype)                         # (TILE_B, 128) f32


def network_forward(x, params, max_tile_b=DEFAULT_TILE_B):
    """x: (B, 288) float32; params: list of (W(in,out) f32, b(1,out) f32) pairs.

    Returns (B, 3) float32 logits, matching the PyTorch module's forward
    (up to bf16 MXU-input precision).
    """
    B = x.shape[0]
    in_dim = LAYER_SIZES[0]

    # Batch tile: multiple of 8 sublanes, capped; pad B up to a tile multiple
    # so every grid step sees a full (8,128)-legal block.
    tile_b = min(max_tile_b, _round_up(B, 8))
    b_pad = _round_up(B, tile_b)
    grid = (b_pad // tile_b,)

    x_p = x.astype(jnp.bfloat16)
    if b_pad != B:
        x_p = jnp.pad(x_p, ((0, b_pad - B), (0, 0)))

    # Preprocess params: weights -> bf16 for the MXU, biases stay f32.
    # Last layer zero-padded to 128 output lanes (padded cols are inert zeros).
    flat_params = []
    n_layers = len(params)
    for li, (W, b) in enumerate(params):
        Wp, bp = W, b
        if li == n_layers - 1:
            Wp = jnp.pad(W, ((0, 0), (0, OUT_PAD - W.shape[1])))
            bp = jnp.pad(b, ((0, 0), (0, OUT_PAD - b.shape[1])))
        flat_params.append(Wp.astype(jnp.bfloat16))
        flat_params.append(bp.astype(jnp.float32))

    def _const_map(i):
        return (0, 0)

    # x / out are tiled over the batch grid; weights & biases are full-shape
    # blocks with a constant index_map -> fetched once, resident across steps.
    # TODO(synk): optionally pack the 10 weight/bias arrays into 1-2 buffers
    # to cut DMA-descriptor overhead at very small batch sizes.
    in_specs = [pl.BlockSpec((tile_b, in_dim), lambda i: (i, 0))]
    in_specs += [pl.BlockSpec(p.shape, _const_map) for p in flat_params]
    out_spec = pl.BlockSpec((tile_b, OUT_PAD), lambda i: (i, 0))

    out = pl.pallas_call(
        _mlp_kernel,
        out_shape=jax.ShapeDtypeStruct((b_pad, OUT_PAD), jnp.float32),
        grid=grid,
        in_specs=in_specs,
        out_specs=out_spec,
        compiler_params=pltpu.CompilerParams(
            dimension_semantics=("parallel",)),
    )(x_p, *flat_params)

    return out[:B, :LAYER_SIZES[-1]]


def init_params(key):
    """Deterministic init matching PyTorch nn.Linear default U(-1/sqrt(fan_in), +1/sqrt(fan_in))."""
    params = []
    for i in range(len(LAYER_SIZES) - 1):
        fan_in, fan_out = LAYER_SIZES[i], LAYER_SIZES[i + 1]
        key, wk, bk = jax.random.split(key, 3)
        bound = 1.0 / jnp.sqrt(fan_in)
        # Stored as (in, out) so the kernel computes x @ W + b.
        W = jax.random.uniform(wk, (fan_in, fan_out), jnp.float32, -bound, bound)
        b = jax.random.uniform(bk, (1, fan_out), jnp.float32, -bound, bound)
        params.append((W, b))
    return params


def reference_forward(x, params):
    """Pure-JAX reference mimicking the kernel's precision policy
    (bf16 MXU inputs, f32 accumulation / bias / ReLU)."""
    h = x.astype(jnp.bfloat16)
    for i, (W, b) in enumerate(params):
        h = jnp.dot(h, W.astype(jnp.bfloat16),
                    preferred_element_type=jnp.float32) + b
        if i < len(params) - 1:
            h = jnp.maximum(h, 0.0).astype(jnp.bfloat16)
    return h


if __name__ == "__main__":
    key = jax.random.PRNGKey(0)
    pkey, xkey = jax.random.split(key)

    params = init_params(pkey)

    # Small case: batch=2 (padded internally to one 8-row tile).
    batch = 2
    x = jax.random.normal(xkey, (batch, LAYER_SIZES[0]), jnp.float32)
    out = jax.block_until_ready(network_forward(x, params))
    ref = reference_forward(x, params)
    assert out.shape == (batch, 3), out.shape
    assert jnp.allclose(out, ref, atol=1e-2, rtol=1e-2), "mismatch vs reference (B=2)"

    # Multi-step grid case: batch=20, forced tile of 8 rows -> grid of 3 steps
    # (exercises batch tiling + remainder padding).
    batch2 = 20
    x2 = jax.random.normal(jax.random.PRNGKey(1), (batch2, LAYER_SIZES[0]), jnp.float32)
    out2 = jax.block_until_ready(network_forward(x2, params, max_tile_b=8))
    ref2 = reference_forward(x2, params)
    assert out2.shape == (batch2, 3), out2.shape
    assert jnp.allclose(out2, ref2, atol=1e-2, rtol=1e-2), "mismatch vs reference (B=20)"

    print("KERNEL_OK")
</pallas_src>

<mosaic_0001>
module attributes {stable_mosaic.version = 11 : i64} {
  func.func @_mlp_kernel(%arg0: i32, %arg1: memref<8x288xbf16, #tpu.memory_space<vmem>>, %arg2: memref<288x64xbf16, #tpu.memory_space<vmem>>, %arg3: memref<1x64xf32, #tpu.memory_space<vmem>>, %arg4: memref<64x128xbf16, #tpu.memory_space<vmem>>, %arg5: memref<1x128xf32, #tpu.memory_space<vmem>>, %arg6: memref<128x128xbf16, #tpu.memory_space<vmem>>, %arg7: memref<1x128xf32, #tpu.memory_space<vmem>>, %arg8: memref<128x64xbf16, #tpu.memory_space<vmem>>, %arg9: memref<1x64xf32, #tpu.memory_space<vmem>>, %arg10: memref<64x128xbf16, #tpu.memory_space<vmem>>, %arg11: memref<1x128xf32, #tpu.memory_space<vmem>>, %arg12: memref<8x128xf32, #tpu.memory_space<vmem>>) attributes {dimension_semantics = [#tpu.dimension_semantics<parallel>], iteration_bounds = array<i64: 1>, scalar_prefetch = 0 : i64, scratch_operands = 0 : i64, tpu.core_type = #tpu.core_type<tc>, window_params = [{transform_indices = @transform_0, window_bounds = array<i64: 8, 288>}, {pipeline_mode = #tpu.pipeline_mode<synchronous>, transform_indices = @transform_1, window_bounds = array<i64: 288, 64>}, {pipeline_mode = #tpu.pipeline_mode<synchronous>, transform_indices = @transform_2, window_bounds = array<i64: 1, 64>}, {pipeline_mode = #tpu.pipeline_mode<synchronous>, transform_indices = @transform_3, window_bounds = array<i64: 64, 128>}, {pipeline_mode = #tpu.pipeline_mode<synchronous>, transform_indices = @transform_4, window_bounds = array<i64: 1, 128>}, {pipeline_mode = #tpu.pipeline_mode<synchronous>, transform_indices = @transform_5, window_bounds = array<i64: 128, 128>}, {pipeline_mode = #tpu.pipeline_mode<synchronous>, transform_indices = @transform_6, window_bounds = array<i64: 1, 128>}, {pipeline_mode = #tpu.pipeline_mode<synchronous>, transform_indices = @transform_7, window_bounds = array<i64: 128, 64>}, {pipeline_mode = #tpu.pipeline_mode<synchronous>, transform_indices = @transform_8, window_bounds = array<i64: 1, 64>}, {pipeline_mode = #tpu.pipeline_mode<synchronous>, transform_indices = @transform_9, window_bounds = array<i64: 64, 128>}, {pipeline_mode = #tpu.pipeline_mode<synchronous>, transform_indices = @transform_10, window_bounds = array<i64: 1, 128>}, {transform_indices = @transform_11, window_bounds = array<i64: 8, 128>}]} {
    %c0 = arith.constant 0 : index
    %c0_0 = arith.constant 0 : index
    %0 = vector.load %arg1[%c0, %c0_0] : memref<8x288xbf16, #tpu.memory_space<vmem>>, vector<8x288xbf16>
    %c0_1 = arith.constant 0 : index
    %c0_2 = arith.constant 0 : index
    %1 = vector.load %arg2[%c0_1, %c0_2] : memref<288x64xbf16, #tpu.memory_space<vmem>>, vector<288x64xbf16>
    %cst = arith.constant dense<0.000000e+00> : vector<8x64xf32>
    %2 = tpu.matmul %0, %1, %cst {dimension_numbers = #tpu.dot_dimension_numbers<[1], [0], [0], [1], [0, 0, 1, 1], [], []>} : vector<8x288xbf16>, vector<288x64xbf16>, vector<8x64xf32> -> vector<8x64xf32>
    %c0_3 = arith.constant 0 : index
    %c0_4 = arith.constant 0 : index
    %3 = vector.load %arg3[%c0_3, %c0_4] : memref<1x64xf32, #tpu.memory_space<vmem>>, vector<1x64xf32>
    %4 = vector.broadcast %3 : vector<1x64xf32> to vector<8x64xf32>
    %5 = arith.addf %2, %4 : vector<8x64xf32>
    %cst_5 = arith.constant 0.000000e+00 : f32
    %6 = vector.broadcast %cst_5 : f32 to vector<8x64xf32>
    %7 = arith.maximumf %5, %6 : vector<8x64xf32>
    %8 = arith.truncf %7 : vector<8x64xf32> to vector<8x64xbf16>
    %c0_6 = arith.constant 0 : index
    %c0_7 = arith.constant 0 : index
    %9 = vector.load %arg4[%c0_6, %c0_7] : memref<64x128xbf16, #tpu.memory_space<vmem>>, vector<64x128xbf16>
    %cst_8 = arith.constant dense<0.000000e+00> : vector<8x128xf32>
    %10 = tpu.matmul %8, %9, %cst_8 {dimension_numbers = #tpu.dot_dimension_numbers<[1], [0], [0], [1], [0, 0, 1, 1], [], []>} : vector<8x64xbf16>, vector<64x128xbf16>, vector<8x128xf32> -> vector<8x128xf32>
    %c0_9 = arith.constant 0 : index
    %c0_10 = arith.constant 0 : index
    %11 = vector.load %arg5[%c0_9, %c0_10] : memref<1x128xf32, #tpu.memory_space<vmem>>, vector<1x128xf32>
    %12 = vector.broadcast %11 : vector<1x128xf32> to vector<8x128xf32>
    %13 = arith.addf %10, %12 : vector<8x128xf32>
    %cst_11 = arith.constant 0.000000e+00 : f32
    %14 = vector.broadcast %cst_11 : f32 to vector<8x128xf32>
    %15 = arith.maximumf %13, %14 : vector<8x128xf32>
    %16 = arith.truncf %15 : vector<8x128xf32> to vector<8x128xbf16>
    %c0_12 = arith.constant 0 : index
    %c0_13 = arith.constant 0 : index
    %17 = vector.load %arg6[%c0_12, %c0_13] : memref<128x128xbf16, #tpu.memory_space<vmem>>, vector<128x128xbf16>
    %cst_14 = arith.constant dense<0.000000e+00> : vector<8x128xf32>
    %18 = tpu.matmul %16, %17, %cst_14 {dimension_numbers = #tpu.dot_dimension_numbers<[1], [0], [0], [1], [0, 0, 1, 1], [], []>} : vector<8x128xbf16>, vector<128x128xbf16>, vector<8x128xf32> -> vector<8x128xf32>
    %c0_15 = arith.constant 0 : index
    %c0_16 = arith.constant 0 : index
    %19 = vector.load %arg7[%c0_15, %c0_16] : memref<1x128xf32, #tpu.memory_space<vmem>>, vector<1x128xf32>
    %20 = vector.broadcast %19 : vector<1x128xf32> to vector<8x128xf32>
    %21 = arith.addf %18, %20 : vector<8x128xf32>
    %cst_17 = arith.constant 0.000000e+00 : f32
    %22 = vector.broadcast %cst_17 : f32 to vector<8x128xf32>
    %23 = arith.maximumf %21, %22 : vector<8x128xf32>
    %24 = arith.truncf %23 : vector<8x128xf32> to vector<8x128xbf16>
    %c0_18 = arith.constant 0 : index
    %c0_19 = arith.constant 0 : index
    %25 = vector.load %arg8[%c0_18, %c0_19] : memref<128x64xbf16, #tpu.memory_space<vmem>>, vector<128x64xbf16>
    %cst_20 = arith.constant dense<0.000000e+00> : vector<8x64xf32>
    %26 = tpu.matmul %24, %25, %cst_20 {dimension_numbers = #tpu.dot_dimension_numbers<[1], [0], [0], [1], [0, 0, 1, 1], [], []>} : vector<8x128xbf16>, vector<128x64xbf16>, vector<8x64xf32> -> vector<8x64xf32>
    %c0_21 = arith.constant 0 : index
    %c0_22 = arith.constant 0 : index
    %27 = vector.load %arg9[%c0_21, %c0_22] : memref<1x64xf32, #tpu.memory_space<vmem>>, vector<1x64xf32>
    %28 = vector.broadcast %27 : vector<1x64xf32> to vector<8x64xf32>
    %29 = arith.addf %26, %28 : vector<8x64xf32>
    %cst_23 = arith.constant 0.000000e+00 : f32
    %30 = vector.broadcast %cst_23 : f32 to vector<8x64xf32>
    %31 = arith.maximumf %29, %30 : vector<8x64xf32>
    %32 = arith.truncf %31 : vector<8x64xf32> to vector<8x64xbf16>
    %c0_24 = arith.constant 0 : index
    %c0_25 = arith.constant 0 : index
    %33 = vector.load %arg10[%c0_24, %c0_25] : memref<64x128xbf16, #tpu.memory_space<vmem>>, vector<64x128xbf16>
    %cst_26 = arith.constant dense<0.000000e+00> : vector<8x128xf32>
    %34 = tpu.matmul %32, %33, %cst_26 {dimension_numbers = #tpu.dot_dimension_numbers<[1], [0], [0], [1], [0, 0, 1, 1], [], []>} : vector<8x64xbf16>, vector<64x128xbf16>, vector<8x128xf32> -> vector<8x128xf32>
    %c0_27 = arith.constant 0 : index
    %c0_28 = arith.constant 0 : index
    %35 = vector.load %arg11[%c0_27, %c0_28] : memref<1x128xf32, #tpu.memory_space<vmem>>, vector<1x128xf32>
    %36 = vector.broadcast %35 : vector<1x128xf32> to vector<8x128xf32>
    %37 = arith.addf %34, %36 : vector<8x128xf32>
    %c0_29 = arith.constant 0 : index
    %c0_30 = arith.constant 0 : index
    %38 = vector.load %arg12[%c0_29, %c0_30] : memref<8x128xf32, #tpu.memory_space<vmem>>, vector<8x128xf32>
    tpu.vector_store %arg12[%c0_29, %c0_30], %37 {strides = array<i32>} : memref<8x128xf32, #tpu.memory_space<vmem>>, vector<8x128xf32>,
    return
  }
  func.func @transform_0(%arg0: i32) -> (i32, i32) {
    %c0_i32 = arith.constant 0 : i32
    %c0_i32_0 = arith.constant 0 : i32
    return %arg0, %c0_i32 : i32, i32
  }
  func.func @transform_1(%arg0: i32) -> (i32, i32) {
    %c0_i32 = arith.constant 0 : i32
    %c0_i32_0 = arith.constant 0 : i32
    %c0_i32_1 = arith.constant 0 : i32
    return %c0_i32, %c0_i32_0 : i32, i32
  }
  func.func @transform_2(%arg0: i32) -> (i32, i32) {
    %c0_i32 = arith.constant 0 : i32
    %c0_i32_0 = arith.constant 0 : i32
    %c0_i32_1 = arith.constant 0 : i32
    return %c0_i32, %c0_i32_0 : i32, i32
  }
  func.func @transform_3(%arg0: i32) -> (i32, i32) {
    %c0_i32 = arith.constant 0 : i32
    %c0_i32_0 = arith.constant 0 : i32
    %c0_i32_1 = arith.constant 0 : i32
    return %c0_i32, %c0_i32_0 : i32, i32
  }
  func.func @transform_4(%arg0: i32) -> (i32, i32) {
    %c0_i32 = arith.constant 0 : i32
    %c0_i32_0 = arith.constant 0 : i32
    %c0_i32_1 = arith.constant 0 : i32
    return %c0_i32, %c0_i32_0 : i32, i32
  }
  func.func @transform_5(%arg0: i32) -> (i32, i32) {
    %c0_i32 = arith.constant 0 : i32
    %c0_i32_0 = arith.constant 0 : i32
    %c0_i32_1 = arith.constant 0 : i32
    return %c0_i32, %c0_i32_0 : i32, i32
  }
  func.func @transform_6(%arg0: i32) -> (i32, i32) {
    %c0_i32 = arith.constant 0 : i32
    %c0_i32_0 = arith.constant 0 : i32
    %c0_i32_1 = arith.constant 0 : i32
    return %c0_i32, %c0_i32_0 : i32, i32
  }
  func.func @transform_7(%arg0: i32) -> (i32, i32) {
    %c0_i32 = arith.constant 0 : i32
    %c0_i32_0 = arith.constant 0 : i32
    %c0_i32_1 = arith.constant 0 : i32
    return %c0_i32, %c0_i32_0 : i32, i32
  }
  func.func @transform_8(%arg0: i32) -> (i32, i32) {
    %c0_i32 = arith.constant 0 : i32
    %c0_i32_0 = arith.constant 0 : i32
    %c0_i32_1 = arith.constant 0 : i32
    return %c0_i32, %c0_i32_0 : i32, i32
  }
  func.func @transform_9(%arg0: i32) -> (i32, i32) {
    %c0_i32 = arith.constant 0 : i32
    %c0_i32_0 = arith.constant 0 : i32
    %c0_i32_1 = arith.constant 0 : i32
    return %c0_i32, %c0_i32_0 : i32, i32
  }
  func.func @transform_10(%arg0: i32) -> (i32, i32) {
    %c0_i32 = arith.constant 0 : i32
    %c0_i32_0 = arith.constant 0 : i32
    %c0_i32_1 = arith.constant 0 : i32
    return %c0_i32, %c0_i32_0 : i32, i32
  }
  func.func @transform_11(%arg0: i32) -> (i32, i32) {
    %c0_i32 = arith.constant 0 : i32
    %c0_i32_0 = arith.constant 0 : i32
    return %arg0, %c0_i32 : i32, i32
  }
}

</mosaic_0001>

<llo_original>
// kernel: tpu_custom_call.1
$region0: #{tpu_custom_call.1}
  #allocation0 [shape = 'u32[]', space=smem, size = 0x4, offset = 0x4, fixed_abs, tag = 'smem constant byte address 0x4 - core index']
  #allocation1 [shape = 'u32[72,128]{1,0:T(1,128)}', space=vmem, size = 0x9000, scoped, tag = 'internal scratch']
  %s0 = inlined_call_operand.vmem [shape: bf16[8,288], index: 0, kind: input, shape index: {}]
  %s1 = inlined_call_operand.vmem [shape: bf16[288,64], index: 1, kind: input, shape index: {}]
  %s2 = inlined_call_operand.vmem [shape: f32[1,64], index: 2, kind: input, shape index: {}]
  %s3 = inlined_call_operand.vmem [shape: bf16[64,128], index: 3, kind: input, shape index: {}]
  %s4 = inlined_call_operand.vmem [shape: f32[1,128], index: 4, kind: input, shape index: {}]
  %s5 = inlined_call_operand.vmem [shape: bf16[128,128], index: 5, kind: input, shape index: {}]
  %s6 = inlined_call_operand.vmem [shape: f32[1,128], index: 6, kind: input, shape index: {}]
  %s7 = inlined_call_operand.vmem [shape: bf16[128,64], index: 7, kind: input, shape index: {}]
  %s8 = inlined_call_operand.vmem [shape: f32[1,64], index: 8, kind: input, shape index: {}]
  %s9 = inlined_call_operand.vmem [shape: bf16[64,128], index: 9, kind: input, shape index: {}]
  %s10 = inlined_call_operand.vmem [shape: f32[1,128], index: 10, kind: input, shape index: {}]
  %s11 = inlined_call_operand.hbm [shape: f32[8,128], index: 11, kind: output, shape index: {}]
  %s12 = sld [smem:[#allocation0]]
  $region54: #{tpu_custom_call.1} parent=0
    _
  %s14 = ssub.s32 1, %s12
  %s15 = scalar_select 0, %s14, %s12
  $region1: #{tpu_custom_call.1} parent=0
    #allocation2 [shape = 'u8[4096]{0}', space=vmem, size = 0x1000, scoped, tag = 'output window, operand 0, single buffered']
    #allocation3 [shape = 's32[1]{0}', space=sflag, size = 0x4, scoped, tag = 'scoped memory for tpu_custom_call.1']
    %16 = vsyncpa [#allocation3], 0
    // Predicated region
    $region2: #{tpu_custom_call.1} parent=1 // pred_check
      _
    $region3: #{tpu_custom_call.1} parent=1 // pred_check_branch
      %18 = sbr.rel (0) target = $region5
    $region4: #{tpu_custom_call.1} parent=1 // pred_region
      _
    $region5: #{tpu_custom_call.1} parent=1 // pred_fallthru
      _
    // Predicated region
    $region6: #{tpu_custom_call.1} parent=1 // pred_check
      _
    $region7: #{tpu_custom_call.1} parent=1 // pred_check_branch
      %20 = sbr.rel (0) target = $region9
    $region8: #{tpu_custom_call.1} parent=1 // pred_region
      _
    $region9: #{tpu_custom_call.1} parent=1 // pred_fallthru
      _
    // Predicated region
    $region10: #{tpu_custom_call.1} parent=1 // pred_check
      _
    $region11: #{tpu_custom_call.1} parent=1 // pred_check_branch
      %22 = sbr.rel (0) target = $region13
    $region12: #{tpu_custom_call.1} parent=1 // pred_region
      _
    $region13: #{tpu_custom_call.1} parent=1 // pred_fallthru
      _
    // Predicated region
    $region14: #{tpu_custom_call.1} parent=1 // pred_check
      _
    $region15: #{tpu_custom_call.1} parent=1 // pred_check_branch
      %24 = sbr.rel (0) target = $region17
    $region16: #{tpu_custom_call.1} parent=1 // pred_region
      _
    $region17: #{tpu_custom_call.1} parent=1 // pred_fallthru
      _
    // Predicated region
    $region18: #{tpu_custom_call.1} parent=1 // pred_check
      _
    $region19: #{tpu_custom_call.1} parent=1 // pred_check_branch
      %26 = sbr.rel (0) target = $region21
    $region20: #{tpu_custom_call.1} parent=1 // pred_region
      _
    $region21: #{tpu_custom_call.1} parent=1 // pred_fallthru
      _
    // Predicated region
    $region22: #{tpu_custom_call.1} parent=1 // pred_check
      _
    $region23: #{tpu_custom_call.1} parent=1 // pred_check_branch
      %28 = sbr.rel (0) target = $region25
    $region24: #{tpu_custom_call.1} parent=1 // pred_region
      _
    $region25: #{tpu_custom_call.1} parent=1 // pred_fallthru
      _
    // Predicated region
    $region26: #{tpu_custom_call.1} parent=1 // pred_check
      _
    $region27: #{tpu_custom_call.1} parent=1 // pred_check_branch
      %30 = sbr.rel (0) target = $region29
    $region28: #{tpu_custom_call.1} parent=1 // pred_region
      _
    $region29: #{tpu_custom_call.1} parent=1 // pred_fallthru
      _
    // Predicated region
    $region30: #{tpu_custom_call.1} parent=1 // pred_check
      _
    $region31: #{tpu_custom_call.1} parent=1 // pred_check_branch
      %32 = sbr.rel (0) target = $region33
    $region32: #{tpu_custom_call.1} parent=1 // pred_region
      _
    $region33: #{tpu_custom_call.1} parent=1 // pred_fallthru
      _
    // Predicated region
    $region34: #{tpu_custom_call.1} parent=1 // pred_check
      _
    $region35: #{tpu_custom_call.1} parent=1 // pred_check_branch
      %34 = sbr.rel (0) target = $region37
    $region36: #{tpu_custom_call.1} parent=1 // pred_region
      _
    $region37: #{tpu_custom_call.1} parent=1 // pred_fallthru
      _
    // Predicated region
    $region38: #{tpu_custom_call.1} parent=1 // pred_check
      _
    $region39: #{tpu_custom_call.1} parent=1 // pred_check_branch
      %36 = sbr.rel (0) target = $region41
    $region40: #{tpu_custom_call.1} parent=1 // pred_region
      _
    $region41: #{tpu_custom_call.1} parent=1 // pred_fallthru
      _
    // Predicated region
    $region42: #{tpu_custom_call.1} parent=1 // pred_check
      _
    $region43: #{tpu_custom_call.1} parent=1 // pred_check_branch
      %38 = sbr.rel (0) target = $region45
    $region44: #{tpu_custom_call.1} parent=1 // pred_region
      _
    $region45: #{tpu_custom_call.1} parent=1 // pred_fallthru
      _
    %v40 = vld [vmem:[%s0] sm:$0xff]
    %v41 = vld [vmem:[%s0 + $0x8] sm:$0xf]
    %v42 = vld [vmem:[%s1] sm:$0xf]
    %v43 = vld [vmem:[%s1 + $0x4] sm:$0xf]
    %v44 = vld [vmem:[%s1 + $0x8] sm:$0xf]
    %v45 = vld [vmem:[%s1 + $0xc] sm:$0xf]
    %v46 = vld [vmem:[%s1 + $0x10] sm:$0xf]
    %v47 = vld [vmem:[%s1 + $0x14] sm:$0xf]
    %v48 = vld [vmem:[%s1 + $0x18] sm:$0xf]
    %v49 = vld [vmem:[%s1 + $0x1c] sm:$0xf]
    %v50 = vld [vmem:[%s1 + $0x20] sm:$0xf]
    %v51 = vld [vmem:[%s1 + $0x24] sm:$0xf]
    %v52 = vld [vmem:[%s1 + $0x28] sm:$0xf]
    %v53 = vld [vmem:[%s1 + $0x2c] sm:$0xf]
    %v54 = vld [vmem:[%s1 + $0x30] sm:$0xf]
    %v55 = vld [vmem:[%s1 + $0x34] sm:$0xf]
    %v56 = vld [vmem:[%s1 + $0x38] sm:$0xf]
    %v57 = vld [vmem:[%s1 + $0x3c] sm:$0xf]
    %v58 = vld [vmem:[%s1 + $0x40] sm:$0xf]
    %v59 = vld [vmem:[%s1 + $0x44] sm:$0xf]
    %v60 = vld [vmem:[%s1 + $0x48] sm:$0xf]
    %v61 = vld [vmem:[%s1 + $0x4c] sm:$0xf]
    %v62 = vld [vmem:[%s1 + $0x50] sm:$0xf]
    %v63 = vld [vmem:[%s1 + $0x54] sm:$0xf]
    %v64 = vld [vmem:[%s1 + $0x58] sm:$0xf]
    %v65 = vld [vmem:[%s1 + $0x5c] sm:$0xf]
    %v66 = vld [vmem:[%s1 + $0x60] sm:$0xf]
    %v67 = vld [vmem:[%s1 + $0x64] sm:$0xf]
    %v68 = vld [vmem:[%s1 + $0x68] sm:$0xf]
    %v69 = vld [vmem:[%s1 + $0x6c] sm:$0xf]
    %v70 = vld [vmem:[%s1 + $0x70] sm:$0xf]
    %v71 = vld [vmem:[%s1 + $0x74] sm:$0xf]
    %v72 = vld [vmem:[%s1 + $0x78] sm:$0xf]
    %v73 = vld [vmem:[%s1 + $0x7c] sm:$0xf]
    %v74 = vld [vmem:[%s1 + $0x80] sm:$0xf]
    %v75 = vld [vmem:[%s1 + $0x84] sm:$0xf]
    %v76 = vld [vmem:[%s1 + $0x88] sm:$0xf]
    %v77 = vld [vmem:[%s1 + $0x8c] sm:$0xf]
    %v78 = vld [vmem:[%s2] sm:$0x1]
    %v80 = vperm.slane %v78, 0
    %v84 = vunpack.c.l.b16 %v40
    %v85 = vunpack.c.h.b16 %v40
    %v86 = vunpack.c.l.b16 %v41
    %v87 = vpack.c.b16 %v84, %v84
    %v88 = vpack.c.b16 %v85, %v85
    %v89 = vpack.c.b16 %v86, %v86
    %v128 = vunpack.c.l.b16 %v42
    %v129 = vunpack.c.l.b16 %v43
    %v130 = vunpack.c.l.b16 %v44
    %v131 = vunpack.c.l.b16 %v45
    %v132 = vunpack.c.l.b16 %v46
    %v133 = vunpack.c.l.b16 %v47
    %v134 = vunpack.c.l.b16 %v48
    %v135 = vunpack.c.l.b16 %v49
    %v136 = vunpack.c.l.b16 %v50
    %v137 = vunpack.c.l.b16 %v51
    %v138 = vunpack.c.l.b16 %v52
    %v139 = vunpack.c.l.b16 %v53
    %v140 = vunpack.c.l.b16 %v54
    %v141 = vunpack.c.l.b16 %v55
    %v142 = vunpack.c.l.b16 %v56
    %v143 = vunpack.c.l.b16 %v57
    %v144 = vunpack.c.l.b16 %v58
    %v145 = vunpack.c.l.b16 %v59
    %v146 = vunpack.c.l.b16 %v60
    %v147 = vunpack.c.l.b16 %v61
    %v148 = vunpack.c.l.b16 %v62
    %v149 = vunpack.c.l.b16 %v63
    %v150 = vunpack.c.l.b16 %v64
    %v151 = vunpack.c.l.b16 %v65
    %v152 = vunpack.c.l.b16 %v66
    %v153 = vunpack.c.l.b16 %v67
    %v154 = vunpack.c.l.b16 %v68
    %v155 = vunpack.c.l.b16 %v69
    %v156 = vunpack.c.l.b16 %v70
    %v157 = vunpack.c.l.b16 %v71
    %v158 = vunpack.c.l.b16 %v72
    %v159 = vunpack.c.l.b16 %v73
    %v160 = vunpack.c.l.b16 %v74
    %v161 = vunpack.c.l.b16 %v75
    %v162 = vunpack.c.l.b16 %v76
    %v163 = vunpack.c.l.b16 %v77
    %v164 = vpack.c.b16 %v129, %v128
    %v165 = vpack.c.b16 %v131, %v130
    %v166 = vpack.c.b16 %v133, %v132
    %v167 = vpack.c.b16 %v135, %v134
    %v168 = vpack.c.b16 %v137, %v136
    %v169 = vpack.c.b16 %v139, %v138
    %v170 = vpack.c.b16 %v141, %v140
    %v171 = vpack.c.b16 %v143, %v142
    %v172 = vpack.c.b16 %v145, %v144
    %v173 = vpack.c.b16 %v147, %v146
    %v174 = vpack.c.b16 %v149, %v148
    %v175 = vpack.c.b16 %v151, %v150
    %v176 = vpack.c.b16 %v153, %v152
    %v177 = vpack.c.b16 %v155, %v154
    %v178 = vpack.c.b16 %v157, %v156
    %v179 = vpack.c.b16 %v159, %v158
    %v180 = vpack.c.b16 %v161, %v160
    %v181 = vpack.c.b16 %v163, %v162
    %vm200 = vcmask 261120
    %v202 = vsel %vm200, %v89, 0
    %204 = vmatpush.bf16.msra.mxu0 %v171
    %205 = vmatpush.bf16.msra.mxu0 %v170
    %206 = vmatpush.bf16.msra.mxu0 %v169
    %207 = vmatpush.bf16.msra.mxu0 %v168
    %208 = vmatpush.bf16.msra.mxu0 %v167
    %209 = vmatpush.bf16.msra.mxu0 %v166
    %210 = vmatpush.bf16.msra.mxu0 %v165
    %211 = vmatpush.bf16.msra.mxu0 %v164
    %212 = vmatmul.bf16.gmra.mxu0 %v87
    %v213 = vpop.f32.mrf.mxu0
    %v214 = vadd.f32 %v80, %v213
    %v215 = vpop.f32.mrf.mxu0
    %216 = vdwg.mxu0
    %217 = vmatpush.bf16.msra.mxu0 %v179
    %218 = vmatpush.bf16.msra.mxu0 %v178
    %219 = vmatpush.bf16.msra.mxu0 %v177
    %220 = vmatpush.bf16.msra.mxu0 %v176
    %221 = vmatpush.bf16.msra.mxu0 %v175
    %222 = vmatpush.bf16.msra.mxu0 %v174
    %223 = vmatpush.bf16.msra.mxu0 %v173
    %224 = vmatpush.bf16.msra.mxu0 %v172
    %225 = vmatmul.bf16.gmra.mxu0 %v88
    %v226 = vpop.f32.mrf.mxu0
    %v227 = vadd.f32 %v214, %v226
    %v228 = vpop.f32.mrf.mxu0
    %229 = vdwg.mxu0
    %230 = vmatpush.bf16.msra.mxu0 0
    %231 = vmatpush.bf16.msra.mxu0 0
    %232 = vmatpush.bf16.msra.mxu0 0
    %233 = vmatpush.bf16.msra.mxu0 0
    %234 = vmatpush.bf16.msra.mxu0 0
    %235 = vmatpush.bf16.msra.mxu0 0
    %236 = vmatpush.bf16.msra.mxu0 %v181
    %237 = vmatpush.bf16.msra.mxu0 %v180
    %238 = vmatmul.bf16.gmra.mxu0 %v202
    %v239 = vpop.f32.mrf.mxu0
    %v240 = vadd.f32 %v227, %v239
    %v241 = vpop.f32.mrf.mxu0
    %242 = vdwg.mxu0
    %v243 = vmax.f32 %v240, 0.0
    %v244 = vpack.c.bf16 %v243, %v243
    %v245 = vld [vmem:[%s3] sm:$0xf]
    %v246 = vld [vmem:[%s3 + $0x4] sm:$0xf]
    %v247 = vld [vmem:[%s3 + $0x8] sm:$0xf]
    %v248 = vld [vmem:[%s3 + $0xc] sm:$0xf]
    %v249 = vld [vmem:[%s3 + $0x10] sm:$0xf]
    %v250 = vld [vmem:[%s3 + $0x14] sm:$0xf]
    %v251 = vld [vmem:[%s3 + $0x18] sm:$0xf]
    %v252 = vld [vmem:[%s3 + $0x1c] sm:$0xf]
    %v253 = vld [vmem:[%s4] sm:$0x1]
    %v255 = vperm.slane %v253, 0
    %v265 = vunpack.c.l.b16 %v245
    %v266 = vunpack.c.l.b16 %v246
    %v267 = vunpack.c.l.b16 %v247
    %v268 = vunpack.c.l.b16 %v248
    %v269 = vunpack.c.l.b16 %v249
    %v270 = vunpack.c.l.b16 %v250
    %v271 = vunpack.c.l.b16 %v251
    %v272 = vunpack.c.l.b16 %v252
    %v273 = vpack.c.b16 %v266, %v265
    %v274 = vpack.c.b16 %v268, %v267
    %v275 = vpack.c.b16 %v270, %v269
    %v276 = vpack.c.b16 %v272, %v271
    %vm281 = vcmask 523264
    %v283 = vsel %vm281, %v244, 0
    %285 = vmatpush.bf16.msra.mxu0 0
    %286 = vmatpush.bf16.msra.mxu0 0
    %287 = vmatpush.bf16.msra.mxu0 0
    %288 = vmatpush.bf16.msra.mxu0 0
    %289 = vmatpush.bf16.msra.mxu0 %v276
    %290 = vmatpush.bf16.msra.mxu0 %v275
    %291 = vmatpush.bf16.msra.mxu0 %v274
    %292 = vmatpush.bf16.msra.mxu0 %v273
    %293 = vmatmul.bf16.gmra.mxu0 %v283
    %v294 = vpop.f32.mrf.mxu0
    %v295 = vadd.f32 %v255, %v294
    %v296 = vpop.f32.mrf.mxu0
    %297 = vdwg.mxu0
    %v298 = vmax.f32 %v295, 0.0
    %v299 = vpack.c.bf16 %v298, %v298
    %v300 = vld [vmem:[%s5] sm:$0xf]
    %v301 = vld [vmem:[%s5 + $0x4] sm:$0xf]
    %v302 = vld [vmem:[%s5 + $0x8] sm:$0xf]
    %v303 = vld [vmem:[%s5 + $0xc] sm:$0xf]
    %v304 = vld [vmem:[%s5 + $0x10] sm:$0xf]
    %v305 = vld [vmem:[%s5 + $0x14] sm:$0xf]
    %v306 = vld [vmem:[%s5 + $0x18] sm:$0xf]
    %v307 = vld [vmem:[%s5 + $0x1c] sm:$0xf]
    %v308 = vld [vmem:[%s5 + $0x20] sm:$0xf]
    %v309 = vld [vmem:[%s5 + $0x24] sm:$0xf]
    %v310 = vld [vmem:[%s5 + $0x28] sm:$0xf]
    %v311 = vld [vmem:[%s5 + $0x2c] sm:$0xf]
    %v312 = vld [vmem:[%s5 + $0x30] sm:$0xf]
    %v313 = vld [vmem:[%s5 + $0x34] sm:$0xf]
    %v314 = vld [vmem:[%s5 + $0x38] sm:$0xf]
    %v315 = vld [vmem:[%s5 + $0x3c] sm:$0xf]
    %v316 = vld [vmem:[%s6] sm:$0x1]
    %v318 = vperm.slane %v316, 0
    %v336 = vunpack.c.l.b16 %v300
    %v337 = vunpack.c.l.b16 %v301
    %v338 = vunpack.c.l.b16 %v302
    %v339 = vunpack.c.l.b16 %v303
    %v340 = vunpack.c.l.b16 %v304
    %v341 = vunpack.c.l.b16 %v305
    %v342 = vunpack.c.l.b16 %v306
    %v343 = vunpack.c.l.b16 %v307
    %v344 = vunpack.c.l.b16 %v308
    %v345 = vunpack.c.l.b16 %v309
    %v346 = vunpack.c.l.b16 %v310
    %v347 = vunpack.c.l.b16 %v311
    %v348 = vunpack.c.l.b16 %v312
    %v349 = vunpack.c.l.b16 %v313
    %v350 = vunpack.c.l.b16 %v314
    %v351 = vunpack.c.l.b16 %v315
    %v352 = vpack.c.b16 %v337, %v336
    %v353 = vpack.c.b16 %v339, %v338
    %v354 = vpack.c.b16 %v341, %v340
    %v355 = vpack.c.b16 %v343, %v342
    %v356 = vpack.c.b16 %v345, %v344
    %v357 = vpack.c.b16 %v347, %v346
    %v358 = vpack.c.b16 %v349, %v348
    %v359 = vpack.c.b16 %v351, %v350
    %368 = vmatpush.bf16.msra.mxu0 %v359
    %369 = vmatpush.bf16.msra.mxu0 %v358
    %370 = vmatpush.bf16.msra.mxu0 %v357
    %371 = vmatpush.bf16.msra.mxu0 %v356
    %372 = vmatpush.bf16.msra.mxu0 %v355
    %373 = vmatpush.bf16.msra.mxu0 %v354
    %374 = vmatpush.bf16.msra.mxu0 %v353
    %375 = vmatpush.bf16.msra.mxu0 %v352
    %376 = vmatmul.bf16.gmra.mxu0 %v299
    %v377 = vpop.f32.mrf.mxu0
    %v378 = vadd.f32 %v318, %v377
    %v379 = vpop.f32.mrf.mxu0
    %380 = vdwg.mxu0
    %v381 = vmax.f32 %v378, 0.0
    %v382 = vpack.c.bf16 %v381, %v381
    %v383 = vld [vmem:[%s7] sm:$0xf]
    %v384 = vld [vmem:[%s7 + $0x4] sm:$0xf]
    %v385 = vld [vmem:[%s7 + $0x8] sm:$0xf]
    %v386 = vld [vmem:[%s7 + $0xc] sm:$0xf]
    %v387 = vld [vmem:[%s7 + $0x10] sm:$0xf]
    %v388 = vld [vmem:[%s7 + $0x14] sm:$0xf]
    %v389 = vld [vmem:[%s7 + $0x18] sm:$0xf]
    %v390 = vld [vmem:[%s7 + $0x1c] sm:$0xf]
    %v391 = vld [vmem:[%s7 + $0x20] sm:$0xf]
    %v392 = vld [vmem:[%s7 + $0x24] sm:$0xf]
    %v393 = vld [vmem:[%s7 + $0x28] sm:$0xf]
    %v394 = vld [vmem:[%s7 + $0x2c] sm:$0xf]
    %v395 = vld [vmem:[%s7 + $0x30] sm:$0xf]
    %v396 = vld [vmem:[%s7 + $0x34] sm:$0xf]
    %v397 = vld [vmem:[%s7 + $0x38] sm:$0xf]
    %v398 = vld [vmem:[%s7 + $0x3c] sm:$0xf]
    %v399 = vld [vmem:[%s8] sm:$0x1]
    %v401 = vperm.slane %v399, 0
    %v419 = vunpack.c.l.b16 %v383
    %v420 = vunpack.c.l.b16 %v384
    %v421 = vunpack.c.l.b16 %v385
    %v422 = vunpack.c.l.b16 %v386
    %v423 = vunpack.c.l.b16 %v387
    %v424 = vunpack.c.l.b16 %v388
    %v425 = vunpack.c.l.b16 %v389
    %v426 = vunpack.c.l.b16 %v390
    %v427 = vunpack.c.l.b16 %v391
    %v428 = vunpack.c.l.b16 %v392
    %v429 = vunpack.c.l.b16 %v393
    %v430 = vunpack.c.l.b16 %v394
    %v431 = vunpack.c.l.b16 %v395
    %v432 = vunpack.c.l.b16 %v396
    %v433 = vunpack.c.l.b16 %v397
    %v434 = vunpack.c.l.b16 %v398
    %v435 = vpack.c.b16 %v420, %v419
    %v436 = vpack.c.b16 %v422, %v421
    %v437 = vpack.c.b16 %v424, %v423
    %v438 = vpack.c.b16 %v426, %v425
    %v439 = vpack.c.b16 %v428, %v427
    %v440 = vpack.c.b16 %v430, %v429
    %v441 = vpack.c.b16 %v432, %v431
    %v442 = vpack.c.b16 %v434, %v433
    %451 = vmatpush.bf16.msra.mxu0 %v442
    %452 = vmatpush.bf16.msra.mxu0 %v441
    %453 = vmatpush.bf16.msra.mxu0 %v440
    %454 = vmatpush.bf16.msra.mxu0 %v439
    %455 = vmatpush.bf16.msra.mxu0 %v438
    %456 = vmatpush.bf16.msra.mxu0 %v437
    %457 = vmatpush.bf16.msra.mxu0 %v436
    %458 = vmatpush.bf16.msra.mxu0 %v435
    %459 = vmatmul.bf16.gmra.mxu0 %v382
    %v460 = vpop.f32.mrf.mxu0
    %v461 = vadd.f32 %v401, %v460
    %v462 = vpop.f32.mrf.mxu0
    %463 = vdwg.mxu0
    %v464 = vmax.f32 %v461, 0.0
    %v465 = vpack.c.bf16 %v464, %v464
    %v466 = vld [vmem:[%s9] sm:$0xf]
    %v467 = vld [vmem:[%s9 + $0x4] sm:$0xf]
    %v468 = vld [vmem:[%s9 + $0x8] sm:$0xf]
    %v469 = vld [vmem:[%s9 + $0xc] sm:$0xf]
    %v470 = vld [vmem:[%s9 + $0x10] sm:$0xf]
    %v471 = vld [vmem:[%s9 + $0x14] sm:$0xf]
    %v472 = vld [vmem:[%s9 + $0x18] sm:$0xf]
    %v473 = vld [vmem:[%s9 + $0x1c] sm:$0xf]
    %v474 = vld [vmem:[%s10] sm:$0x1]
    %v476 = vperm.slane %v474, 0
    %v486 = vunpack.c.l.b16 %v466
    %v487 = vunpack.c.l.b16 %v467
    %v488 = vunpack.c.l.b16 %v468
    %v489 = vunpack.c.l.b16 %v469
    %v490 = vunpack.c.l.b16 %v470
    %v491 = vunpack.c.l.b16 %v471
    %v492 = vunpack.c.l.b16 %v472
    %v493 = vunpack.c.l.b16 %v473
    %v494 = vpack.c.b16 %v487, %v486
    %v495 = vpack.c.b16 %v489, %v488
    %v496 = vpack.c.b16 %v491, %v490
    %v497 = vpack.c.b16 %v493, %v492
    %v503 = vsel %vm281, %v465, 0
    %505 = vmatpush.bf16.msra.mxu0 0
    %506 = vmatpush.bf16.msra.mxu0 0
    %507 = vmatpush.bf16.msra.mxu0 0
    %508 = vmatpush.bf16.msra.mxu0 0
    %509 = vmatpush.bf16.msra.mxu0 %v497
    %510 = vmatpush.bf16.msra.mxu0 %v496
    %511 = vmatpush.bf16.msra.mxu0 %v495
    %512 = vmatpush.bf16.msra.mxu0 %v494
    %513 = vmatmul.bf16.gmra.mxu0 %v503
    %v514 = vpop.f32.mrf.mxu0
    %v515 = vadd.f32 %v476, %v514
    %v516 = vpop.f32.mrf.mxu0
    %517 = vdwg.mxu0
    %518 = vst [vmem:[#allocation2] sm:$0xff] %v515
    // Predicated region
    $region46: #{tpu_custom_call.1} parent=1 // pred_check
      _
    $region47: #{tpu_custom_call.1} parent=1 // pred_check_branch
      %520 = sbr.rel (0) target = $region49
    $region48: #{tpu_custom_call.1} parent=1 // pred_region
      %522 = vsyncadd [#allocation3], 0
      %s524 = sshll.u32 [#allocation2], 4
      %s525 = int_to_ptr.vmem [resolvable:$true] %s524
      %s526 = sshll.u32 %s11, 4
      %s527 = int_to_ptr.hbm [resolvable:$true] %s526
      %529 = dma.vmem_to_hbm [thread:$0]  %s525, 128, %s527, [#allocation3]
    $region49: #{tpu_custom_call.1} parent=1 // pred_fallthru
      _
    // Predicated region
    $region50: #{tpu_custom_call.1} parent=1 // pred_check
      _
    $region51: #{tpu_custom_call.1} parent=1 // pred_check_branch
      %531 = sbr.rel (0) target = $region53
    $region52: #{tpu_custom_call.1} parent=1 // pred_region
      %533 = dma.done [#allocation3], 128
    $region53: #{tpu_custom_call.1} parent=1 // pred_fallthru
      _
    %534 = vsyncpa [#allocation3], 1

</llo_original>
